<compile_context>
chip_gen: v6e
topology: v6e:2x2x1
jax: 0.10.0
libtpu: 0.0.40
codegen_flags: <defaults>
</compile_context>

<pallas_src>
import jax
import jax.numpy as jnp
from jax.experimental import pallas as pl
from jax.experimental.pallas import tpu as pltpu


def _temp_softmax_kernel(inv_t_ref, x_ref, o_ref):
    # inv_t_ref: (1,) f32 in SMEM (1 / temperature, precomputed in wrapper).
    # x_ref / o_ref: (tb, H, W) VMEM blocks; softmax over axis 1 (H).
    inv_t = inv_t_ref[0]
    x = x_ref[...].astype(jnp.float32) * inv_t
    m = jnp.max(x, axis=1, keepdims=True)
    e = jnp.exp(x - m)
    s = jnp.sum(e, axis=1, keepdims=True)
    # EUP approximate-reciprocal seed + two Newton-Raphson refinements.  The
    # refinements act only on the H-reduced (1/H-sized) tensor, so they are
    # nearly free while restoring full f32 accuracy (rows sum to 1 to ~1e-6).
    inv = pl.reciprocal(s, approx=True)
    inv = inv * (2.0 - s * inv)
    inv = inv * (2.0 - s * inv)
    o_ref[...] = (e * inv).astype(o_ref.dtype)


def _vmem_budget(itemsize: int):
    """Returns (max block elements, vmem_limit_bytes), generation-aware."""
    try:
        vmem_bytes = int(pltpu.get_tpu_info().vmem_capacity_bytes)
    except Exception:  # no TPU visible at trace time (e.g. interpret mode)
        vmem_bytes = 64 * 1024 * 1024  # most conservative (v7x per-TC)
    if vmem_bytes >= 96 * 1024 * 1024:      # v5e / v6e: 128 MiB physical
        vmem_limit = 96 * 1024 * 1024
    else:                                   # v7x: 64 MiB per TensorCore
        vmem_limit = 48 * 1024 * 1024
    # Pipelined footprint per block element: 2x input + 2x output double
    # buffers (input dtype) + ~3 block-sized f32 temporaries (x, e, e*inv)
    # from the in-kernel upcast.  Spend ~half the limit on the work block.
    per_elem_bytes = 4 * itemsize + 3 * 4
    block_elems = max(1, (vmem_limit // 2) // per_elem_bytes)
    return block_elems, vmem_limit


def _largest_divisor_at_most(n: int, cap: int) -> int:
    cap = max(1, min(cap, n))
    best = 1
    i = 1
    while i * i <= n:
        if n % i == 0:
            for d in (i, n // i):
                if best < d <= cap:
                    best = d
        i += 1
    return best


def temp_softmax(x: jax.Array, temperature) -> jax.Array:
    """softmax(x / temperature, axis=2) for x of shape (N, C, H, W)."""
    n, c, h, w = x.shape
    nc = n * c
    itemsize = x.dtype.itemsize
    inv_t = (1.0 / jnp.asarray(temperature, dtype=jnp.float32)).reshape((1,))

    block_elems, vmem_limit = _vmem_budget(itemsize)
    # Cap so the grid has >= 2 steps (keeps both v7x TensorCores busy; no-op
    # cost on v5e/v6e) and never exceeds the VMEM-derived block budget.
    tb_cap = max(1, min(block_elems // (h * w), pl.cdiv(nc, 2), nc))
    # Prefer a block count that divides N*C exactly (no ragged masked tail),
    # unless that would shrink the block by more than 2x.
    tb_div = _largest_divisor_at_most(nc, tb_cap)
    tb = tb_div if 2 * tb_div >= tb_cap else tb_cap
    grid = (pl.cdiv(nc, tb),)

    x3 = x.reshape(nc, h, w)  # contiguous reshape -> free view, no HBM pass
    out3 = pl.pallas_call(
        _temp_softmax_kernel,
        out_shape=jax.ShapeDtypeStruct((nc, h, w), x.dtype),
        grid=grid,
        in_specs=[
            pl.BlockSpec(memory_space=pltpu.MemorySpace.SMEM),
            pl.BlockSpec((tb, h, w), lambda i: (i, 0, 0)),
        ],
        out_specs=pl.BlockSpec((tb, h, w), lambda i: (i, 0, 0)),
        compiler_params=pltpu.CompilerParams(
            dimension_semantics=("parallel",),
            vmem_limit_bytes=vmem_limit,
        ),
        cost_estimate=pl.CostEstimate(
            flops=7 * x.size,
            transcendentals=x.size,
            bytes_accessed=2 * x.size * itemsize,
        ),
    )(inv_t, x3)
    return out3.reshape(n, c, h, w)


def _reference(x, temperature):
    scaled = x.astype(jnp.float32) / jnp.asarray(temperature, jnp.float32)
    return jax.nn.softmax(scaled, axis=2).astype(x.dtype)


if __name__ == "__main__":
    key = jax.random.PRNGKey(0)
    temperature = jnp.float32(1.5)  # learnable scalar; module default is 1.0

    # Small-W case.
    x_small = jax.random.normal(key, (2, 4, 16, 16), dtype=jnp.float32)
    out_small = jax.block_until_ready(temp_softmax(x_small, temperature))
    ref_small = _reference(x_small, temperature)
    assert out_small.shape == x_small.shape
    assert jnp.allclose(out_small, ref_small, atol=1e-4, rtol=1e-4), "mismatch (small-W)"
    assert jnp.allclose(jnp.sum(out_small, axis=2), 1.0, atol=1e-3)

    # Wide-W case.
    x_wide = jax.random.normal(jax.random.PRNGKey(1), (2, 3, 8, 128), dtype=jnp.float32)
    out_wide = jax.block_until_ready(temp_softmax(x_wide, temperature))
    ref_wide = _reference(x_wide, temperature)
    assert out_wide.shape == x_wide.shape
    assert jnp.allclose(out_wide, ref_wide, atol=1e-4, rtol=1e-4), "mismatch (wide-W)"
    assert jnp.allclose(jnp.sum(out_wide, axis=2), 1.0, atol=1e-3)

    print("KERNEL_OK")
</pallas_src>

<mosaic_0001>
module attributes {stable_mosaic.version = 11 : i64} {
  func.func @_temp_softmax_kernel(%arg0: i32, %arg1: memref<1xf32, #tpu.memory_space<smem>>, %arg2: memref<4x16x16xf32, #tpu.memory_space<vmem>>, %arg3: memref<4x16x16xf32, #tpu.memory_space<vmem>>) attributes {dimension_semantics = [#tpu.dimension_semantics<parallel>], iteration_bounds = array<i64: 2>, scalar_prefetch = 0 : i64, scratch_operands = 0 : i64, tpu.core_type = #tpu.core_type<tc>, window_params = [{transform_indices = @transform_0, window_bounds = array<i64: 1>}, {transform_indices = @transform_1, window_bounds = array<i64: 4, 16, 16>}, {transform_indices = @transform_2, window_bounds = array<i64: 4, 16, 16>}]} {
    %c0 = arith.constant 0 : index
    %0 = memref.load %arg1[%c0] : memref<1xf32, #tpu.memory_space<smem>>
    %c0_0 = arith.constant 0 : index
    %c0_1 = arith.constant 0 : index
    %c0_2 = arith.constant 0 : index
    %1 = vector.load %arg2[%c0_0, %c0_1, %c0_2] : memref<4x16x16xf32, #tpu.memory_space<vmem>>, vector<4x16x16xf32>
    %2 = vector.broadcast %0 : f32 to vector<4x16x16xf32>
    %3 = arith.mulf %1, %2 : vector<4x16x16xf32>
    %cst = arith.constant dense<0xFF800000> : vector<4x16xf32>
    %4 = vector.multi_reduction <maximumf>, %3, %cst [1] : vector<4x16x16xf32> to vector<4x16xf32>
    %5 = vector.shape_cast %4 : vector<4x16xf32> to vector<4x1x16xf32>
    %6 = vector.broadcast %5 : vector<4x1x16xf32> to vector<4x16x16xf32>
    %7 = arith.subf %3, %6 : vector<4x16x16xf32>
    %8 = math.exp %7 : vector<4x16x16xf32>
    %cst_3 = arith.constant dense<0.000000e+00> : vector<4x16xf32>
    %9 = vector.multi_reduction <add>, %8, %cst_3 [1] : vector<4x16x16xf32> to vector<4x16xf32>
    %10 = vector.shape_cast %9 : vector<4x16xf32> to vector<4x1x16xf32>
    %11 = tpu.reciprocal %10 {approx = true} : vector<4x1x16xf32> -> vector<4x1x16xf32>
    %12 = arith.mulf %10, %11 : vector<4x1x16xf32>
    %cst_4 = arith.constant 2.000000e+00 : f32
    %13 = vector.broadcast %cst_4 : f32 to vector<4x1x16xf32>
    %14 = arith.subf %13, %12 : vector<4x1x16xf32>
    %15 = arith.mulf %11, %14 : vector<4x1x16xf32>
    %16 = arith.mulf %10, %15 : vector<4x1x16xf32>
    %cst_5 = arith.constant 2.000000e+00 : f32
    %17 = vector.broadcast %cst_5 : f32 to vector<4x1x16xf32>
    %18 = arith.subf %17, %16 : vector<4x1x16xf32>
    %19 = arith.mulf %15, %18 : vector<4x1x16xf32>
    %20 = vector.broadcast %19 : vector<4x1x16xf32> to vector<4x16x16xf32>
    %21 = arith.mulf %8, %20 : vector<4x16x16xf32>
    %c0_6 = arith.constant 0 : index
    %c0_7 = arith.constant 0 : index
    %c0_8 = arith.constant 0 : index
    %22 = vector.load %arg3[%c0_6, %c0_7, %c0_8] : memref<4x16x16xf32, #tpu.memory_space<vmem>>, vector<4x16x16xf32>
    tpu.vector_store %arg3[%c0_6, %c0_7, %c0_8], %21 {strides = array<i32>} : memref<4x16x16xf32, #tpu.memory_space<vmem>>, vector<4x16x16xf32>,
    return
  }
  func.func @transform_0(%arg0: i32) -> i32 {
    %c0_i32 = arith.constant 0 : i32
    %c0_i32_0 = arith.constant 0 : i32
    return %c0_i32 : i32
  }
  func.func @transform_1(%arg0: i32) -> (i32, i32, i32) {
    %c0_i32 = arith.constant 0 : i32
    %c0_i32_0 = arith.constant 0 : i32
    %c0_i32_1 = arith.constant 0 : i32
    return %arg0, %c0_i32, %c0_i32_0 : i32, i32, i32
  }
  func.func @transform_2(%arg0: i32) -> (i32, i32, i32) {
    %c0_i32 = arith.constant 0 : i32
    %c0_i32_0 = arith.constant 0 : i32
    %c0_i32_1 = arith.constant 0 : i32
    return %arg0, %c0_i32, %c0_i32_0 : i32, i32, i32
  }
}

</mosaic_0001>

<llo_original>
// kernel: tpu_custom_call.1
$region0: #{tpu_custom_call.1}
  #allocation0 [shape = 'u32[]', space=smem, size = 0x4, offset = 0x4, fixed_abs, tag = 'smem constant byte address 0x4 - core index']
  #allocation1 [shape = 'u32[144,128]{1,0:T(1,128)}', space=vmem, size = 0x12000, scoped, tag = 'internal scratch']
  #allocation2 [shape = 'f32[1]{0:T(128)S(6)}', space=smem, size = 0x200, scoped, tag = 'scoped memory for tpu_custom_call.1']
  %s0 = inlined_call_operand.<no memory space> [shape: f32[1], index: 0, kind: input, shape index: {}]
  %s1 = inlined_call_operand.hbm [shape: f32[8,16,16], index: 1, kind: input, shape index: {}]
  %s2 = inlined_call_operand.hbm [shape: f32[8,16,16], index: 2, kind: output, shape index: {}]
  %s3 = sld [smem:[#allocation0]]
  $region45: #{tpu_custom_call.1} parent=0
    _
  %s5 = ssub.s32 1, %s3
  %s6 = scalar_select 0, %s5, %s3
  %7 = sst [smem:[#allocation2]] %s0
  $region1: #{tpu_custom_call.1} parent=0
    #allocation3 [shape = 'u8[65536]{0}', space=vmem, size = 0x10000, scoped, tag = 'input window, operand 1']
    #allocation4 [shape = 's32[2]{0}', space=sflag, size = 0x8, scoped, tag = 'scoped memory for tpu_custom_call.1']
    #allocation5 [shape = 's32[2]{0}', space=sflag, size = 0x8, scoped, tag = 'scoped memory for tpu_custom_call.1']
    #allocation6 [shape = 'u8[65536]{0}', space=vmem, size = 0x10000, scoped, tag = 'output window, operand 0']
    %8 = vsyncpa [#allocation4], 0
    %s9 = scalar_lea.sflag [#allocation4], 1
    %10 = vsyncpa %s9, 0
    %11 = vsyncpa [#allocation5], 0
    %s12 = scalar_lea.sflag [#allocation5], 1
    %13 = vsyncpa %s12, 0
    loop: start=0, step=1, limit=4
    $region2: #{tpu_custom_call.1} parent=1 // loop_pre_header
      _
    $region3: #{tpu_custom_call.1} parent=1 // loop_header
      %s15 = sphi 0, %s19
      %p16 = scmp.ge.s32.totalorder %s15, 4
      %s23 = sphi 0, %s23
      %s25 = sphi 0, %s23
      %s26 = sphi 0, %s25
      %s40 = sphi 0, %s26
      %s46 = sphi 0, %s48
      %s49 = sphi 0, %s46
      %s50 = sphi 0, %s49
      %s66 = sphi 0, %s50
      %s72 = sphi 0, %s74
      %s75 = sphi 0, %s72
      %s76 = sphi 0, %s75
      %s92 = sphi 0, %s76
    $region4: #{tpu_custom_call.1} parent=1 // loop_header_branch
      %18 = sbr.rel (%p16) target = $region8
    $region5: #{tpu_custom_call.1} parent=1 // loop_body
      %s20 = ssub.s32 %s15, 1
      %s21 = ssub.s32 %s15, 2
      %s22 = sadd.s32 %s15, 1
      %s24 = sadd.s32 %s23, 1
      %p27 = scmp.eq.s32.totalorder %s15, 1
      %p28 = scmp.ne.s32.totalorder %s23, %s25
      %p29 = scmp.eq.s32.totalorder %s15, 0
      %p30 = por %p28, %p29
      %p31 = scmp.ne.s32.totalorder %s23, %s25
      %p32 = scmp.eq.s32.totalorder %s20, 1
      %p33 = por %p31, %p32
      %p34 = scmp.ne.s32.totalorder %s25, %s26
      %p35 = scmp.eq.s32.totalorder %s20, 0
      %p36 = por %p34, %p35
      %p37 = scmp.ne.s32.totalorder %s25, %s26
      %p38 = scmp.eq.s32.totalorder %s21, 1
      %p39 = por %p37, %p38
      %p41 = scmp.ne.s32.totalorder %s26, %s40
      %p42 = scmp.eq.s32.totalorder %s21, 0
      %p43 = por %p41, %p42
      %s44 = ssub.s32 %s15, %s22
      %p45 = scmp.eq.s32.totalorder %s44, 0
      %s47 = sadd.s32 %s46, 1
      %s48 = scalar_select %p45, %s46, %s47
      %p51 = pneg %p45
      %p52 = scmp.eq.s32.totalorder %s15, 1
      %p53 = por %p51, %p52
      %p54 = scmp.ne.s32.totalorder %s46, %s49
      %p55 = scmp.eq.s32.totalorder %s15, 0
      %p56 = por %p54, %p55
      %p57 = scmp.ne.s32.totalorder %s46, %s49
      %p58 = scmp.eq.s32.totalorder %s20, 1
      %p59 = por %p57, %p58
      %p60 = scmp.ne.s32.totalorder %s49, %s50
      %p61 = scmp.eq.s32.totalorder %s20, 0
      %p62 = por %p60, %p61
      %p63 = scmp.ne.s32.totalorder %s49, %s50
      %p64 = scmp.eq.s32.totalorder %s21, 1
      %p65 = por %p63, %p64
      %p67 = scmp.ne.s32.totalorder %s50, %s66
      %p68 = scmp.eq.s32.totalorder %s21, 0
      %p69 = por %p67, %p68
      %s70 = ssub.s32 %s15, %s22
      %p71 = scmp.eq.s32.totalorder %s70, 0
      %s73 = sadd.s32 %s72, 1
      %s74 = scalar_select %p71, %s72, %s73
      %p77 = pneg %p71
      %p78 = scmp.eq.s32.totalorder %s15, 1
      %p79 = por %p77, %p78
      %p80 = scmp.ne.s32.totalorder %s72, %s75
      %p81 = scmp.eq.s32.totalorder %s15, 0
      %p82 = por %p80, %p81
      %p83 = scmp.ne.s32.totalorder %s72, %s75
      %p84 = scmp.eq.s32.totalorder %s20, 1
      %p85 = por %p83, %p84
      %p86 = scmp.ne.s32.totalorder %s75, %s76
      %p87 = scmp.eq.s32.totalorder %s20, 0
      %p88 = por %p86, %p87
      %p89 = scmp.ne.s32.totalorder %s75, %s76
      %p90 = scmp.eq.s32.totalorder %s21, 1
      %p91 = por %p89, %p90
      %p93 = scmp.ne.s32.totalorder %s76, %s92
      %p94 = scmp.eq.s32.totalorder %s21, 0
      %p95 = por %p93, %p94
      %p96 = scmp.le.s32.totalorder 1, %s15
      %p97 = scmp.lt.s32.totalorder %s15, 3
      %p98 = pnand %p96, %p97
      %p99 = pneg %p98
      // Predicated region
      $region9: #{tpu_custom_call.1} parent=5 // pred_check
        _
      $region10: #{tpu_custom_call.1} parent=5 // pred_check_branch
        %101 = sbr.rel (%p98) target = $region12
      $region11: #{tpu_custom_call.1} parent=5 // pred_region
        %s102 = ssub.s32 %s15, 1
        // Predicated region
        $region13: #{tpu_custom_call.1} parent=11 // pred_check
          %p103 = pneg %p36
        $region14: #{tpu_custom_call.1} parent=11 // pred_check_branch
          %105 = sbr.rel (%p103) target = $region16
        $region15: #{tpu_custom_call.1} parent=11 // pred_region
          _
        $region16: #{tpu_custom_call.1} parent=11 // pred_fallthru
          _
      $region12: #{tpu_custom_call.1} parent=5 // pred_fallthru
        _
      %p106 = scmp.lt.s32.totalorder %s15, 2
      // Predicated region
      $region17: #{tpu_custom_call.1} parent=5 // pred_check
        %p107 = pneg %p106
      $region18: #{tpu_custom_call.1} parent=5 // pred_check_branch
        %109 = sbr.rel (%p107) target = $region20
      $region19: #{tpu_custom_call.1} parent=5 // pred_region
        // Predicated region
        $region21: #{tpu_custom_call.1} parent=19 // pred_check
          %p110 = pneg %p56
        $region22: #{tpu_custom_call.1} parent=19 // pred_check_branch
          %112 = sbr.rel (%p110) target = $region24
        $region23: #{tpu_custom_call.1} parent=19 // pred_region
          %s113 = sand.u32 %s46, 1
          %s114 = scalar_lea.sflag [#allocation4], %s113
          %s115 = sand.u32 %s46, 1
          %s116 = smul.addr %s115, 64
          %s117 = scalar_lea.vmem [#allocation3], %s116
          %s118 = smul.u32 4, %s15
          %s120 = ssub.s32 1024, 1024
          %121 = vsyncadd %s114, %s120
          %s122 = smul.addr %s118, 2
          %s123 = smul.addr %s122, 128
          %s124 = scalar_lea.hbm %s1, %s123
          %s125 = sshll.u32 %s117, 4
          %s126 = int_to_ptr.vmem [resolvable:$true] %s125
          %131 = dma.hbm_to_vmem [thread:$0]  %s124, 1024, %s126, %s114, 128, 128, 8
        $region24: #{tpu_custom_call.1} parent=19 // pred_fallthru
          _
      $region20: #{tpu_custom_call.1} parent=5 // pred_fallthru
        _
      %p132 = scmp.le.s32.totalorder 1, %s15
      %p133 = scmp.lt.s32.totalorder %s15, 3
      %p134 = pnand %p132, %p133
      %p135 = pneg %p134
      // Predicated region
      $region25: #{tpu_custom_call.1} parent=5 // pred_check
        _
      $region26: #{tpu_custom_call.1} parent=5 // pred_check_branch
        %137 = sbr.rel (%p134) target = $region28
      $region27: #{tpu_custom_call.1} parent=5 // pred_region
        %s138 = ssub.s32 %s15, 1
        %s139 = sand.u32 %s49, 1
        %s140 = scalar_lea.sflag [#allocation4], %s139
        %s141 = sand.u32 %s49, 1
        %s142 = smul.addr %s141, 64
        %s143 = scalar_lea.vmem [#allocation3], %s142
        // Predicated region
        $region29: #{tpu_custom_call.1} parent=27 // pred_check
          %p144 = pneg %p62
        $region30: #{tpu_custom_call.1} parent=27 // pred_check_branch
          %146 = sbr.rel (%p144) target = $region32
        $region31: #{tpu_custom_call.1} parent=27 // pred_region
          %147 = dma.done %s140, 1024
        $region32: #{tpu_custom_call.1} parent=27 // pred_fallthru
          _
        %p148 = pneg %p36
        %p149 = pneg %p33
        %s150 = sand.u32 %s49, 1
        %s151 = scalar_lea.sflag [#allocation4], %s150
        %s152 = sand.u32 %s49, 1
        %s153 = smul.addr %s152, 64
        %s154 = scalar_lea.vmem [#allocation3], %s153
        %p155 = pneg %p62
        %p156 = pneg %p59
        %p157 = pneg %p88
        %p158 = pneg %p85
        %s159 = sand.u32 %s75, 1
        %s160 = scalar_lea.sflag [#allocation5], %s159
        %s161 = sand.u32 %s75, 1
        %s162 = smul.addr %s161, 64
        %s163 = scalar_lea.vmem [#allocation6], %s162
        %s164 = smul.u32 4, %s20
        %s165 = smul.u32 4, %s20
        %s166 = sld [smem:[#allocation2]]
        %v167 = vld [vmem:[%s143] sm:$0xff]
        %v168 = vld [vmem:[%s143 + $0x8] sm:$0xff]
        %v169 = vld [vmem:[%s143 + $0x10] sm:$0xff]
        %v170 = vld [vmem:[%s143 + $0x18] sm:$0xff]
        %v171 = vld [vmem:[%s143 + $0x20] sm:$0xff]
        %v172 = vld [vmem:[%s143 + $0x28] sm:$0xff]
        %v173 = vld [vmem:[%s143 + $0x30] sm:$0xff]
        %v174 = vld [vmem:[%s143 + $0x38] sm:$0xff]
        %v175 = vstv %s166
        %v176 = vmul.f32 %v167, %v175
        %v177 = vmul.f32 %v168, %v175
        %v178 = vmul.f32 %v169, %v175
        %v179 = vmul.f32 %v170, %v175
        %v180 = vmul.f32 %v171, %v175
        %v181 = vmul.f32 %v172, %v175
        %v182 = vmul.f32 %v173, %v175
        %v183 = vmul.f32 %v174, %v175
        %vm184 = vcmask 130048
        %v185 = vsel %vm184, %v176, -inf
        %v186 = vsel %vm184, %v177, -inf
        %v187 = vmax.f32 %v185, %v186
        %v188 = vrot.slane %v187, 4
        %v189 = vmax.f32 %v187, %v188
        %v190 = vrot.slane %v189, 2
        %v191 = vmax.f32 %v189, %v190
        %v192 = vrot.slane %v191, 1
        %v193 = vmax.f32 %v191, %v192
        %v194 = vsel %vm184, %v178, -inf
        %v195 = vsel %vm184, %v179, -inf
        %v196 = vmax.f32 %v194, %v195
        %v197 = vrot.slane %v196, 4
        %v198 = vmax.f32 %v196, %v197
        %v199 = vrot.slane %v198, 2
        %v200 = vmax.f32 %v198, %v199
        %v201 = vrot.slane %v200, 1
        %v202 = vmax.f32 %v200, %v201
        %v203 = vsel %vm184, %v180, -inf
        %v204 = vsel %vm184, %v181, -inf
        %v205 = vmax.f32 %v203, %v204
        %v206 = vrot.slane %v205, 4
        %v207 = vmax.f32 %v205, %v206
        %v208 = vrot.slane %v207, 2
        %v209 = vmax.f32 %v207, %v208
        %v210 = vrot.slane %v209, 1
        %v211 = vmax.f32 %v209, %v210
        %v212 = vsel %vm184, %v182, -inf
        %v213 = vsel %vm184, %v183, -inf
        %v214 = vmax.f32 %v212, %v213
        %v215 = vrot.slane %v214, 4
        %v216 = vmax.f32 %v214, %v215
        %v217 = vrot.slane %v216, 2
        %v218 = vmax.f32 %v216, %v217
        %v219 = vrot.slane %v218, 1
        %v220 = vmax.f32 %v218, %v219
        %v221 = vsub.f32 %v176, %v193
        %v222 = vsub.f32 %v177, %v193
        %v223 = vsub.f32 %v178, %v202
        %v224 = vsub.f32 %v179, %v202
        %v225 = vsub.f32 %v180, %v211
        %v226 = vsub.f32 %v181, %v211
        %v227 = vsub.f32 %v182, %v220
        %v228 = vsub.f32 %v183, %v220
        %v229 = vmul.f32 %v221, 1.442695
        %v230 = vpow.pop %v229
        %v231 = vmul.f32 %v222, 1.442695
        %v232 = vpow.pop %v231
        %v233 = vmul.f32 %v223, 1.442695
        %v234 = vpow.pop %v233
        %v235 = vmul.f32 %v224, 1.442695
        %v236 = vpow.pop %v235
        %v237 = vmul.f32 %v225, 1.442695
        %v238 = vpow.pop %v237
        %v239 = vmul.f32 %v226, 1.442695
        %v240 = vpow.pop %v239
        %v241 = vmul.f32 %v227, 1.442695
        %v242 = vpow.pop %v241
        %v243 = vmul.f32 %v228, 1.442695
        %v244 = vpow.pop %v243
        %v245 = vsel %vm184, %v230, 0.0
        %v246 = vsel %vm184, %v232, 0.0
        %v247 = vadd.f32 %v245, %v246
        %v248 = vrot.slane %v247, 4
        %v249 = vadd.f32 %v247, %v248
        %v250 = vrot.slane %v249, 2
        %v251 = vadd.f32 %v249, %v250
        %v252 = vrot.slane %v251, 1
        %v253 = vadd.f32 %v251, %v252
        %v254 = vsel %vm184, %v234, 0.0
        %v255 = vsel %vm184, %v236, 0.0
        %v256 = vadd.f32 %v254, %v255
        %v257 = vrot.slane %v256, 4
        %v258 = vadd.f32 %v256, %v257
        %v259 = vrot.slane %v258, 2
        %v260 = vadd.f32 %v258, %v259
        %v261 = vrot.slane %v260, 1
        %v262 = vadd.f32 %v260, %v261
        %v263 = vsel %vm184, %v238, 0.0
        %v264 = vsel %vm184, %v240, 0.0
        %v265 = vadd.f32 %v263, %v264
        %v266 = vrot.slane %v265, 4
        %v267 = vadd.f32 %v265, %v266
        %v268 = vrot.slane %v267, 2
        %v269 = vadd.f32 %v267, %v268
        %v270 = vrot.slane %v269, 1
        %v271 = vadd.f32 %v269, %v270
        %v272 = vsel %vm184, %v242, 0.0
        %v273 = vsel %vm184, %v244, 0.0
        %v274 = vadd.f32 %v272, %v273
        %v275 = vrot.slane %v274, 4
        %v276 = vadd.f32 %v274, %v275
        %v277 = vrot.slane %v276, 2
        %v278 = vadd.f32 %v276, %v277
        %v279 = vrot.slane %v278, 1
        %v280 = vadd.f32 %v278, %v279
        %v281 = vrcp.pop %v253
        %v282 = vrcp.pop %v262
        %v283 = vrcp.pop %v271
        %v284 = vrcp.pop %v280
        %v285 = vmul.f32 %v253, %v281
        %v286 = vmul.f32 %v262, %v282
        %v287 = vmul.f32 %v271, %v283
        %v288 = vmul.f32 %v280, %v284
        %v289 = vsub.f32 2.0, %v285
        %v290 = vsub.f32 2.0, %v286
        %v291 = vsub.f32 2.0, %v287
        %v292 = vsub.f32 2.0, %v288
        %v293 = vmul.f32 %v281, %v289
        %v294 = vmul.f32 %v282, %v290
        %v295 = vmul.f32 %v283, %v291
        %v296 = vmul.f32 %v284, %v292
        %v297 = vmul.f32 %v253, %v293
        %v298 = vmul.f32 %v262, %v294
        %v299 = vmul.f32 %v271, %v295
        %v300 = vmul.f32 %v280, %v296
        %v301 = vsub.f32 2.0, %v297
        %v302 = vsub.f32 2.0, %v298
        %v303 = vsub.f32 2.0, %v299
        %v304 = vsub.f32 2.0, %v300
        %v305 = vmul.f32 %v293, %v301
        %v306 = vmul.f32 %v294, %v302
        %v307 = vmul.f32 %v295, %v303
        %v308 = vmul.f32 %v296, %v304
        %v309 = vmul.f32 %v230, %v305
        %v310 = vmul.f32 %v232, %v305
        %v311 = vmul.f32 %v234, %v306
        %v312 = vmul.f32 %v236, %v306
        %v313 = vmul.f32 %v238, %v307
        %v314 = vmul.f32 %v240, %v307
        %v315 = vmul.f32 %v242, %v308
        %v316 = vmul.f32 %v244, %v308
        %317 = vst.msk [vmem:[%s163] sm:$0xff] %vm184, %v309
        %318 = vst.msk [vmem:[%s163 + $0x8] sm:$0xff] %vm184, %v310
        %319 = vst.msk [vmem:[%s163 + $0x10] sm:$0xff] %vm184, %v311
        %320 = vst.msk [vmem:[%s163 + $0x18] sm:$0xff] %vm184, %v312
        %321 = vst.msk [vmem:[%s163 + $0x20] sm:$0xff] %vm184, %v313
        %322 = vst.msk [vmem:[%s163 + $0x28] sm:$0xff] %vm184, %v314
        %323 = vst.msk [vmem:[%s163 + $0x30] sm:$0xff] %vm184, %v315
        %324 = vst.msk [vmem:[%s163 + $0x38] sm:$0xff] %vm184, %v316
        %s325 = sand.u32 %s75, 1
        %s326 = scalar_lea.sflag [#allocation5], %s325
        %s327 = sand.u32 %s75, 1
        %s328 = smul.addr %s327, 64
        %s329 = scalar_lea.vmem [#allocation6], %s328
        // Predicated region
        $region33: #{tpu_custom_call.1} parent=27 // pred_check
          %p330 = pneg %p85
        $region34: #{tpu_custom_call.1} parent=27 // pred_check_branch
          %332 = sbr.rel (%p330) target = $region36
        $region35: #{tpu_custom_call.1} parent=27 // pred_region
          %s333 = smul.u32 4, %s20
          %s335 = ssub.s32 1024, 1024
          %336 = vsyncadd %s326, %s335
          %s337 = smul.addr %s333, 2
          %s338 = smul.addr %s337, 128
          %s339 = scalar_lea.hbm %s2, %s338
          %s340 = sshll.u32 %s329, 4
          %s341 = int_to_ptr.vmem [resolvable:$true] %s340
          %346 = dma.vmem_to_hbm [thread:$0]  %s341, 1024, %s339, %s326, 128, 128, 8
        $region36: #{tpu_custom_call.1} parent=27 // pred_fallthru
          _
      $region28: #{tpu_custom_call.1} parent=5 // pred_fallthru
        _
      %p347 = scmp.le.s32.totalorder 2, %s15
      // Predicated region
      $region37: #{tpu_custom_call.1} parent=5 // pred_check
        %p348 = pneg %p347
      $region38: #{tpu_custom_call.1} parent=5 // pred_check_branch
        %350 = sbr.rel (%p348) target = $region40
      $region39: #{tpu_custom_call.1} parent=5 // pred_region
        %s351 = ssub.s32 %s15, 2
        // Predicated region
        $region41: #{tpu_custom_call.1} parent=39 // pred_check
          %p352 = pneg %p91
        $region42: #{tpu_custom_call.1} parent=39 // pred_check_branch
          %354 = sbr.rel (%p352) target = $region44
        $region43: #{tpu_custom_call.1} parent=39 // pred_region
          %s355 = sand.u32 %s76, 1
          %s356 = scalar_lea.sflag [#allocation5], %s355
          %s357 = sand.u32 %s76, 1
          %s358 = smul.addr %s357, 64
          %s359 = scalar_lea.vmem [#allocation6], %s358
          %360 = dma.done %s356, 1024
        $region44: #{tpu_custom_call.1} parent=39 // pred_fallthru
          _
      $region40: #{tpu_custom_call.1} parent=5 // pred_fallthru
        _
    $region6: #{tpu_custom_call.1} parent=1 // loop_footer
      %s19 = sadd.s32 1, %s15
    $region7: #{tpu_custom_call.1} parent=1 // loop_footer_branch
      %14 = sbr.rel target = $region3
    $region8: #{tpu_custom_call.1} parent=1 // loop_exit
      _
    %361 = vsyncpa [#allocation4], 1
    %s362 = scalar_lea.sflag [#allocation4], 1
    %363 = vsyncpa %s362, 1
    %364 = vsyncpa [#allocation5], 1
    %s365 = scalar_lea.sflag [#allocation5], 1
    %366 = vsyncpa %s365, 1

</llo_original>
